<compile_context>
chip_gen: v7x
topology: tpu7x:2x2x1
jax: 0.10.0
libtpu: 0.0.40
codegen_flags: <defaults>
</compile_context>

<pallas_src>
import math

import jax
import jax.numpy as jnp
from jax.experimental import pallas as pl
from jax.experimental.pallas import tpu as pltpu

_BATCH_TILES = (1024, 512, 256, 128, 64, 32, 16, 8)
_DICT_TILES = (2048, 1024, 512, 256, 128)


# ------------------------------ small helpers -------------------------------
def _round_up(n, m):
    return ((n + m - 1) // m) * m


def _pad2(a, rows, cols):
    pr, pc = rows - a.shape[0], cols - a.shape[1]
    if pr == 0 and pc == 0:
        return a
    return jnp.pad(a, ((0, pr), (0, pc)))


def _vmem_budget():
    # Per-generation budget: ~80% of physical VMEM, capped at 112 MiB.
    # v7x (64 MiB)  -> ~51 MiB; v5e/v6e (128 MiB) -> ~102 MiB.
    cap = 64 * 1024 * 1024
    try:
        info = pltpu.get_tpu_info()
        cap = int(getattr(info, "vmem_capacity_bytes", cap))
    except Exception:
        pass
    return max(32 * 1024 * 1024, min(int(cap * 0.8), 112 * 1024 * 1024))


def _compiler_params(dims, est_bytes, budget):
    # est_bytes already includes the double-buffer factor; add 20% headroom.
    limit = max(32 * 1024 * 1024, min(int(est_bytes * 1.2), budget))
    return pltpu.CompilerParams(dimension_semantics=dims,
                                vmem_limit_bytes=limit)


def _enc_tiles(Bp, Fp, Dp, budget):
    # Prefer the largest dict tile (W_enc streamed once; fewer x re-streams),
    # then the largest batch tile that still fits the VMEM budget.
    for tf in _DICT_TILES:
        if tf > Fp or Fp % tf:
            continue
        for tb in _BATCH_TILES:
            if tb > Bp or Bp % tb:
                continue
            est = 2 * (tb * Dp * 2) + 2 * (Dp * tf * 2) + 2 * (tb * tf * 4)
            if est <= budget:
                return tb, tf, est
    tb, tf = min(8, Bp), min(128, Fp)
    return tb, tf, 2 * (tb * Dp * 2) + 2 * (Dp * tf * 2) + 2 * (tb * tf * 4)


def _dec_tiles(Bp, Fp, Dp, budget):
    # Prefer the largest batch tile (cuts W_dec re-streaming, the decoder's
    # HBM roofline), then the widest output tile (fewer acts re-streams),
    # then the largest dict tile.
    n_cands = tuple(dict.fromkeys((Dp, 1024, 512, 256, 128)))
    for tb in _BATCH_TILES:
        if tb > Bp or Bp % tb:
            continue
        for tn in n_cands:
            if tn > Dp or Dp % tn:
                continue
            for tf in _DICT_TILES:
                if tf > Fp or Fp % tf:
                    continue
                est = (2 * (tb * tf * 2) + 2 * (tf * tn * 2)
                       + 2 * (tn * 4) + 2 * (tb * tn * 4))
                if est <= budget:
                    return tb, tf, tn, est
    tb, tf, tn = min(8, Bp), min(128, Fp), min(128, Dp)
    est = (2 * (tb * tf * 2) + 2 * (tf * tn * 2)
           + 2 * (tn * 4) + 2 * (tb * tn * 4))
    return tb, tf, tn, est


# ----------------------------- encoder kernel -------------------------------
def _encoder_kernel(xc_ref, wenc_ref, acts_ref):
    # xc_ref: (TB, Dp) bf16; wenc_ref: (Dp, TF) bf16 (natural layout, NN dot);
    # acts_ref: (TB, TF) f32.
    acts = jnp.dot(xc_ref[...], wenc_ref[...],
                   preferred_element_type=jnp.float32)
    acts_ref[...] = jnp.maximum(acts, 0.0)


def encoder(x_cent_p, W_enc_p):
    """relu(x_cent_p @ W_enc_p). x_cent_p (Bp, Dp) bf16, W_enc_p (Dp, Fp) bf16 -> (Bp, Fp) f32."""
    Bp, Dp = x_cent_p.shape
    Fp = W_enc_p.shape[1]
    budget = _vmem_budget()
    tb, tf, est = _enc_tiles(Bp, Fp, Dp, budget)
    # NOTE: activations stay f32 so batch top-k tie behavior matches the f32
    # reference exactly (bf16 output would halve this HBM stream if tolerable).
    return pl.pallas_call(
        _encoder_kernel,
        out_shape=jax.ShapeDtypeStruct((Bp, Fp), jnp.float32),
        grid_spec=pltpu.PrefetchScalarGridSpec(
            num_scalar_prefetch=0,
            # Dict axis OUTER, batch axis INNER: W_enc tile index is constant
            # along the inner axis, so each weight tile is DMA'd exactly once.
            grid=(Fp // tf, Bp // tb),
            in_specs=[
                pl.BlockSpec((tb, Dp), lambda j, b: (b, 0)),   # x_cent (re-streamed, small)
                pl.BlockSpec((Dp, tf), lambda j, b: (0, j)),   # W_enc columns (streamed once)
            ],
            out_specs=pl.BlockSpec((tb, tf), lambda j, b: (b, j)),
        ),
        compiler_params=_compiler_params(("parallel", "parallel"), est, budget),
    )(x_cent_p, W_enc_p)


# ----------------------------- decoder kernel -------------------------------
def _decoder_kernel(mask_ref, at_ref, wdec_ref, bdec_ref, xrec_ref):
    b = pl.program_id(0)
    j = pl.program_id(2)

    @pl.when(j == 0)
    def _():
        # Output block is VMEM-resident across the dict axis (its index_map is
        # constant in j): seed it with b_dec and accumulate straight into it.
        xrec_ref[...] = jnp.broadcast_to(bdec_ref[...], xrec_ref.shape)

    # Skip MXU work on dict tiles with no selected (nonzero) features for this
    # batch tile. acts_topk has <= top_k*B nonzeros out of B*F.
    # TODO(synk): full win needs a data-dependent index_map (MoE grouped-matmul
    # pattern) so inactive W_dec tiles are not even DMA'd.
    @pl.when(mask_ref[b, j] != 0)
    def _():
        xrec_ref[...] += jnp.dot(at_ref[...], wdec_ref[...],
                                 preferred_element_type=jnp.float32)


def decoder(acts_topk_bf16, W_dec_p, b_dec_p):
    """acts_topk (Bp, Fp) bf16 @ W_dec_p (Fp, Dp) bf16 + b_dec_p (1, Dp) f32 -> (Bp, Dp) f32."""
    Bp, Fp = acts_topk_bf16.shape
    Dp = W_dec_p.shape[1]
    budget = _vmem_budget()
    tb, tf, tn, est = _dec_tiles(Bp, Fp, Dp, budget)
    nb, nn, nf = Bp // tb, Dp // tn, Fp // tf
    # Per-(batch-tile, dict-tile) activity mask, scalar-prefetched into SMEM.
    tile_mask = (acts_topk_bf16.reshape(nb, tb, nf, tf) != 0).any(
        axis=(1, 3)).astype(jnp.int32)
    return pl.pallas_call(
        _decoder_kernel,
        out_shape=jax.ShapeDtypeStruct((Bp, Dp), jnp.float32),
        grid_spec=pltpu.PrefetchScalarGridSpec(
            num_scalar_prefetch=1,
            grid=(nb, nn, nf),                       # reduction (dict) axis last
            in_specs=[
                pl.BlockSpec((tb, tf), lambda b, n, j, m: (b, j)),   # acts_topk
                pl.BlockSpec((tf, tn), lambda b, n, j, m: (j, n)),   # W_dec rows
                pl.BlockSpec((1, tn), lambda b, n, j, m: (0, n)),    # b_dec
            ],
            out_specs=pl.BlockSpec((tb, tn), lambda b, n, j, m: (b, n)),
        ),
        compiler_params=_compiler_params(
            ("parallel", "parallel", "arbitrary"), est, budget),
    )(tile_mask, acts_topk_bf16, W_dec_p, b_dec_p)


# --------------------------- auxiliary loss (glue) ---------------------------
def _auxiliary_loss(x_f32, x_rec_f32, acts, num_batches_not_active, W_dec, cfg):
    # Static-shape reformulation of the reference's dynamic dead-column top-k:
    # mask non-dead columns to -inf, take top_k_aux per row, zero ranks beyond
    # min(top_k_aux, num_dead), scatter back to full width, decode with W_dec.
    # Reference uses >= here (and strict > for num_dead_features) -- kept as-is.
    dead_mask = num_batches_not_active >= cfg["n_batches_to_dead"]
    num_dead = jnp.sum(dead_mask.astype(jnp.int32))
    B, F = acts.shape
    k_aux = min(cfg["top_k_aux"], F)

    def compute():
        residual = x_f32 - x_rec_f32
        acts_dead = jnp.where(dead_mask[None, :], acts,
                              jnp.full_like(acts, -jnp.inf))
        vals, idxs = jax.lax.top_k(acts_dead, k_aux)              # (B, k_aux)
        keep = jnp.arange(k_aux)[None, :] < jnp.minimum(k_aux, num_dead)
        vals = jnp.where(keep, vals, 0.0)
        acts_aux = jnp.zeros_like(acts).at[
            jnp.arange(B)[:, None], idxs].set(vals)               # (B, F)
        # bf16 MXU decode with f32 accumulation (was a full dense f32 matmul).
        x_rec_aux = jnp.dot(acts_aux.astype(jnp.bfloat16),
                            W_dec.astype(jnp.bfloat16),
                            preferred_element_type=jnp.float32)   # (B, D)
        return cfg["aux_penalty"] * jnp.mean((x_rec_aux - residual) ** 2)

    return jax.lax.cond(num_dead > 0, compute,
                        lambda: jnp.asarray(0.0, jnp.float32))


# --------------------------------- forward -----------------------------------
def batch_topk_sae_forward(params, num_batches_not_active, x, cfg):
    # preprocess_input: cfg['input_unit_norm'] == False -> identity path
    B, D = x.shape
    F = cfg["dict_size"]
    Dp = _round_up(D, 128)        # lane-dense last dim for all kernel I/O
    Fp = _round_up(F, 128)
    Bp = _round_up(B, 8)          # sublane-aligned batch (no full-extent fallback)

    b_dec = params["b_dec"].astype(jnp.float32)

    # Hoisted centering: one (B, D) VPU op instead of per-tile repeats in-kernel.
    x_cent_p = _pad2((x.astype(jnp.float32) - b_dec).astype(jnp.bfloat16), Bp, Dp)
    # Natural (D, F) layout -> no transpose anywhere.
    # TODO(synk): in production keep W_enc/W_dec pre-padded bf16 in the train
    # state to avoid these per-step cast/pad passes.
    W_enc_p = _pad2(params["W_enc"].astype(jnp.bfloat16), Dp, Fp)     # (Dp, Fp)

    acts_p = encoder(x_cent_p, W_enc_p)        # (Bp, Fp) f32, post-ReLU; pads are 0
    acts = acts_p[:B, :F]
    # NOTE: b_enc exists as a parameter but the reference forward never uses it.

    # Exact batch top-k (matches torch.topk + scatter up to tie order).
    # Candidate reduction: any global top-(k*B) element is within the top-(k*B)
    # of its own row, so reduce per-row first and only sort B*k*B candidates.
    kk = min(cfg["top_k"] * B, B * F)
    if kk < Fp:
        row_vals, row_idx = jax.lax.top_k(acts_p, kk)                  # (Bp, kk)
        top_vals, cand = jax.lax.top_k(row_vals.reshape(-1), kk)       # (kk,)
        rows = cand // kk
        cols = row_idx[rows, cand % kk]
        flat_idx = rows * Fp + cols
    else:
        top_vals, flat_idx = jax.lax.top_k(acts_p.reshape(-1), kk)
    acts_topk_p = (jnp.zeros((Bp * Fp,), jnp.float32)
                   .at[flat_idx].set(top_vals).reshape(Bp, Fp))
    acts_topk = acts_topk_p[:B, :F]

    W_dec_p = _pad2(params["W_dec"].astype(jnp.bfloat16), Fp, Dp)      # (Fp, Dp)
    b_dec_p = _pad2(b_dec.reshape(1, D), 1, Dp)                        # (1, Dp)
    x_rec_p = decoder(acts_topk_p.astype(jnp.bfloat16), W_dec_p, b_dec_p)
    x_reconstruct = x_rec_p[:B, :D]                                    # (B, D)

    # update_inactive_features (uses acts_topk, as in the reference)
    feat_sum = acts_topk.sum(0)
    nbna = num_batches_not_active + (feat_sum == 0).astype(jnp.float32)
    nbna = jnp.where(feat_sum > 0, 0.0, nbna)

    # ------------------------------ loss dict --------------------------------
    xf = x.astype(jnp.float32)
    xr = x_reconstruct.astype(jnp.float32)
    at = acts_topk.astype(jnp.float32)

    l2_loss = jnp.mean((xr - xf) ** 2)
    l1_norm = jnp.mean(jnp.sum(jnp.abs(at), axis=-1))
    l1_loss = cfg["l1_coeff"] * l1_norm
    l0_per_row = jnp.sum((at > 0).astype(jnp.float32), axis=-1)
    l0_norm = jnp.mean(l0_per_row)

    aux_loss = _auxiliary_loss(xf, xr, acts, nbna,
                               params["W_dec"], cfg).astype(x.dtype)

    loss = l2_loss + l1_loss + aux_loss
    num_dead_features = (
        jnp.sum((nbna > cfg["n_batches_to_dead"]).astype(jnp.float32))
        / cfg["dict_size"])

    sae_out = x_reconstruct   # postprocess_output is identity (no unit norm)
    activation_variance = jnp.mean((l0_per_row - cfg["top_k"]) ** 2)
    l1_norm_per_feature = (jnp.sum(jnp.abs(at))
                           / jnp.maximum(jnp.sum((at > 0).astype(jnp.float32)),
                                         1.0))

    return {
        "sae_out": sae_out,
        "feature_acts": acts_topk,
        "num_dead_features": num_dead_features,
        "loss": loss,
        "l1_loss": l1_loss,
        "l2_loss": l2_loss,
        "l0_norm": l0_norm,
        "l1_norm": l1_norm,
        "aux_loss": aux_loss,
        "activation_variance": activation_variance,
        "l1_norm_per_feature": l1_norm_per_feature,
    }, nbna


# ----------------------------- parameter init --------------------------------
def init_params(cfg, key):
    act_size, dict_size = cfg["act_size"], cfg["dict_size"]
    # kaiming_uniform_ on (act_size, dict_size): fan_in = dict_size,
    # bound = sqrt(6 / fan_in)   (deterministic synthetic init, not a checkpoint)
    bound = math.sqrt(6.0 / dict_size)
    W_enc = jax.random.uniform(key, (act_size, dict_size), jnp.float32,
                               minval=-bound, maxval=bound)
    W_dec = W_enc.T
    W_dec = W_dec / jnp.linalg.norm(W_dec, axis=-1, keepdims=True)
    return {
        "b_dec": jnp.zeros((act_size,), jnp.float32),
        "b_enc": jnp.zeros((dict_size,), jnp.float32),  # unused in forward
        "W_enc": W_enc,
        "W_dec": W_dec,
    }


if __name__ == "__main__":
    cfg = {
        "seed": 0,
        "act_size": 64,
        "dict_size": 256,
        "top_k": 4,
        "top_k_aux": 32,
        "l1_coeff": 1e-3,
        "aux_penalty": 1.0 / 32,
        "n_batches_to_dead": 5,
        "input_unit_norm": False,
    }
    key = jax.random.PRNGKey(0)
    kp, kx = jax.random.split(key)
    params = init_params(cfg, kp)
    num_batches_not_active = jnp.zeros((cfg["dict_size"],), jnp.float32)

    B = 8
    x = jax.random.normal(kx, (B, cfg["act_size"]), jnp.float32)

    fwd = jax.jit(lambda p, s, xx: batch_topk_sae_forward(p, s, xx, cfg))
    output, new_state = fwd(params, num_batches_not_active, x)
    jax.block_until_ready(output)
    jax.block_until_ready(new_state)

    # structural sanity: batch top-k keeps at most top_k * B nonzero activations
    assert int(jnp.sum(output["feature_acts"] > 0)) <= cfg["top_k"] * B
    assert output["sae_out"].shape == (B, cfg["act_size"])
    assert output["feature_acts"].shape == (B, cfg["dict_size"])

    # numerical check against a pure-JAX reference using the same bf16 inputs
    def reference(p, xx):
        x_cent = (xx - p["b_dec"]).astype(jnp.bfloat16)
        acts = jnp.maximum(jnp.dot(x_cent, p["W_enc"].astype(jnp.bfloat16),
                                   preferred_element_type=jnp.float32), 0.0)
        kk = cfg["top_k"] * xx.shape[0]
        v, i = jax.lax.top_k(acts.reshape(-1), kk)
        atk = jnp.zeros_like(acts.reshape(-1)).at[i].set(v).reshape(acts.shape)
        xr = jnp.dot(atk.astype(jnp.bfloat16), p["W_dec"].astype(jnp.bfloat16),
                     preferred_element_type=jnp.float32) + p["b_dec"]
        return atk, xr

    ref_topk, ref_rec = jax.jit(reference)(params, x)
    assert jnp.allclose(output["feature_acts"], ref_topk, rtol=1e-2, atol=1e-2)
    assert jnp.allclose(output["sae_out"], ref_rec, rtol=1e-2, atol=1e-2)

    print("KERNEL_OK")
</pallas_src>

<mosaic_0001>
module attributes {stable_mosaic.version = 11 : i64} {
  func.func @_encoder_kernel(%arg0: i32, %arg1: i32, %arg2: memref<8x128xbf16, #tpu.memory_space<vmem>>, %arg3: memref<128x256xbf16, #tpu.memory_space<vmem>>, %arg4: memref<8x256xf32, #tpu.memory_space<vmem>>) attributes {dimension_semantics = [#tpu.dimension_semantics<parallel>, #tpu.dimension_semantics<parallel>], iteration_bounds = array<i64: 1, 1>, scalar_prefetch = 0 : i64, scratch_operands = 0 : i64, tpu.core_type = #tpu.core_type<tc>, window_params = [{transform_indices = @transform_0, window_bounds = array<i64: 8, 128>}, {transform_indices = @transform_1, window_bounds = array<i64: 128, 256>}, {transform_indices = @transform_2, window_bounds = array<i64: 8, 256>}]} {
    %c0 = arith.constant 0 : index
    %c0_0 = arith.constant 0 : index
    %0 = vector.load %arg2[%c0, %c0_0] : memref<8x128xbf16, #tpu.memory_space<vmem>>, vector<8x128xbf16>
    %c0_1 = arith.constant 0 : index
    %c0_2 = arith.constant 0 : index
    %1 = vector.load %arg3[%c0_1, %c0_2] : memref<128x256xbf16, #tpu.memory_space<vmem>>, vector<128x256xbf16>
    %cst = arith.constant dense<0.000000e+00> : vector<8x256xf32>
    %2 = tpu.matmul %0, %1, %cst {dimension_numbers = #tpu.dot_dimension_numbers<[1], [0], [0], [1], [0, 0, 1, 1], [], []>} : vector<8x128xbf16>, vector<128x256xbf16>, vector<8x256xf32> -> vector<8x256xf32>
    %cst_3 = arith.constant 0.000000e+00 : f32
    %3 = vector.broadcast %cst_3 : f32 to vector<8x256xf32>
    %4 = arith.maximumf %2, %3 : vector<8x256xf32>
    %c0_4 = arith.constant 0 : index
    %c0_5 = arith.constant 0 : index
    %5 = vector.load %arg4[%c0_4, %c0_5] : memref<8x256xf32, #tpu.memory_space<vmem>>, vector<8x256xf32>
    tpu.vector_store %arg4[%c0_4, %c0_5], %4 {strides = array<i32>} : memref<8x256xf32, #tpu.memory_space<vmem>>, vector<8x256xf32>,
    return
  }
  func.func @transform_0(%arg0: i32, %arg1: i32) -> (i32, i32) {
    %c0_i32 = arith.constant 0 : i32
    %c0_i32_0 = arith.constant 0 : i32
    return %arg1, %c0_i32 : i32, i32
  }
  func.func @transform_1(%arg0: i32, %arg1: i32) -> (i32, i32) {
    %c0_i32 = arith.constant 0 : i32
    %c0_i32_0 = arith.constant 0 : i32
    return %c0_i32, %arg0 : i32, i32
  }
  func.func @transform_2(%arg0: i32, %arg1: i32) -> (i32, i32) {
    %c0_i32 = arith.constant 0 : i32
    return %arg1, %arg0 : i32, i32
  }
}

module attributes {stable_mosaic.version = 11 : i64} {
  func.func @_decoder_kernel(%arg0: i32, %arg1: i32, %arg2: i32, %arg3: memref<1x1xi32, #tpu.memory_space<smem>>, %arg4: memref<8x256xbf16, #tpu.memory_space<vmem>>, %arg5: memref<256x128xbf16, #tpu.memory_space<vmem>>, %arg6: memref<1x128xf32, #tpu.memory_space<vmem>>, %arg7: memref<8x128xf32, #tpu.memory_space<vmem>>) attributes {dimension_semantics = [#tpu.dimension_semantics<parallel>, #tpu.dimension_semantics<parallel>, #tpu.dimension_semantics<arbitrary>], iteration_bounds = array<i64: 1, 1, 1>, scalar_prefetch = 1 : i64, scratch_operands = 0 : i64, tpu.core_type = #tpu.core_type<tc>, window_params = [{transform_indices = @transform_0, window_bounds = array<i64: 8, 256>}, {transform_indices = @transform_1, window_bounds = array<i64: 256, 128>}, {transform_indices = @transform_2, window_bounds = array<i64: 1, 128>}, {transform_indices = @transform_3, window_bounds = array<i64: 8, 128>}]} {
    %c0_i32 = arith.constant 0 : i32
    %0 = arith.cmpi eq, %arg2, %c0_i32 : i32
    %1 = arith.extui %0 : i1 to i32
    %c0_i32_0 = arith.constant 0 : i32
    %2 = arith.cmpi ne, %1, %c0_i32_0 : i32
    scf.if %2 {
      %c0 = arith.constant 0 : index
      %c0_3 = arith.constant 0 : index
      %9 = vector.load %arg6[%c0, %c0_3] : memref<1x128xf32, #tpu.memory_space<vmem>>, vector<1x128xf32>
      %10 = vector.shape_cast %9 : vector<1x128xf32> to vector<1x128xf32>
      %11 = vector.broadcast %10 : vector<1x128xf32> to vector<8x128xf32>
      %c0_4 = arith.constant 0 : index
      %c0_5 = arith.constant 0 : index
      %12 = vector.load %arg7[%c0_4, %c0_5] : memref<8x128xf32, #tpu.memory_space<vmem>>, vector<8x128xf32>
      tpu.vector_store %arg7[%c0_4, %c0_5], %11 {strides = array<i32>} : memref<8x128xf32, #tpu.memory_space<vmem>>, vector<8x128xf32>,
    } else {
    }
    %3 = arith.index_cast %arg0 : i32 to index
    %4 = arith.index_cast %arg2 : i32 to index
    %5 = memref.load %arg3[%3, %4] : memref<1x1xi32, #tpu.memory_space<smem>>
    %c0_i32_1 = arith.constant 0 : i32
    %6 = arith.cmpi ne, %5, %c0_i32_1 : i32
    %7 = arith.extui %6 : i1 to i32
    %c0_i32_2 = arith.constant 0 : i32
    %8 = arith.cmpi ne, %7, %c0_i32_2 : i32
    scf.if %8 {
      %c0 = arith.constant 0 : index
      %c0_3 = arith.constant 0 : index
      %9 = vector.load %arg7[%c0, %c0_3] : memref<8x128xf32, #tpu.memory_space<vmem>>, vector<8x128xf32>
      %c0_4 = arith.constant 0 : index
      %c0_5 = arith.constant 0 : index
      %10 = vector.load %arg4[%c0_4, %c0_5] : memref<8x256xbf16, #tpu.memory_space<vmem>>, vector<8x256xbf16>
      %c0_6 = arith.constant 0 : index
      %c0_7 = arith.constant 0 : index
      %11 = vector.load %arg5[%c0_6, %c0_7] : memref<256x128xbf16, #tpu.memory_space<vmem>>, vector<256x128xbf16>
      %cst = arith.constant dense<0.000000e+00> : vector<8x128xf32>
      %12 = tpu.matmul %10, %11, %cst {dimension_numbers = #tpu.dot_dimension_numbers<[1], [0], [0], [1], [0, 0, 1, 1], [], []>} : vector<8x256xbf16>, vector<256x128xbf16>, vector<8x128xf32> -> vector<8x128xf32>
      %13 = arith.addf %9, %12 : vector<8x128xf32>
      %c0_8 = arith.constant 0 : index
      %c0_9 = arith.constant 0 : index
      %14 = vector.load %arg7[%c0_8, %c0_9] : memref<8x128xf32, #tpu.memory_space<vmem>>, vector<8x128xf32>
      tpu.vector_store %arg7[%c0_8, %c0_9], %13 {strides = array<i32>} : memref<8x128xf32, #tpu.memory_space<vmem>>, vector<8x128xf32>,
    } else {
    }
    return
  }
  func.func @transform_0(%arg0: i32, %arg1: i32, %arg2: i32, %arg3: memref<1x1xi32, #tpu.memory_space<smem>>) -> (i32, i32) {
    %c0_i32 = arith.constant 0 : i32
    return %arg0, %arg2 : i32, i32
  }
  func.func @transform_1(%arg0: i32, %arg1: i32, %arg2: i32, %arg3: memref<1x1xi32, #tpu.memory_space<smem>>) -> (i32, i32) {
    %c0_i32 = arith.constant 0 : i32
    return %arg2, %arg1 : i32, i32
  }
  func.func @transform_2(%arg0: i32, %arg1: i32, %arg2: i32, %arg3: memref<1x1xi32, #tpu.memory_space<smem>>) -> (i32, i32) {
    %c0_i32 = arith.constant 0 : i32
    %c0_i32_0 = arith.constant 0 : i32
    return %c0_i32, %arg1 : i32, i32
  }
  func.func @transform_3(%arg0: i32, %arg1: i32, %arg2: i32, %arg3: memref<1x1xi32, #tpu.memory_space<smem>>) -> (i32, i32) {
    %c0_i32 = arith.constant 0 : i32
    return %arg0, %arg1 : i32, i32
  }
}

</mosaic_0001>

<llo_original>
// kernel: _lambda_.2
$region0: #{_lambda_.2}
  #allocation0 [shape = 'u32[]', space=smem, size = 0x4, offset = 0x4, fixed_abs, tag = 'smem constant byte address 0x4 - core index']
  #allocation1 [shape = 'u32[144,128]{1,0:T(1,128)}', space=vmem, size = 0x12000, scoped, tag = 'internal scratch']
  %s0 = inlined_call_operand.vmem [shape: bf16[8,128], index: 0, kind: input, shape index: {}]
  %s1 = inlined_call_operand.vmem [shape: bf16[128,256], index: 1, kind: input, shape index: {}]
  %s2 = inlined_call_operand.vmem [shape: f32[8,256], index: 2, kind: output, shape index: {}]
  %s3 = sld [smem:[#allocation0]]
  $region18: #{_lambda_.2} parent=0
    _
  %s5 = ssub.s32 1, %s3
  %s6 = scalar_select 0, %s5, %s3
  // Predicated region
  $region2: #{_lambda_.2} parent=0 // pred_check
    _
  $region3: #{_lambda_.2} parent=0 // pred_check_branch
    %8 = sbr.rel (0) target = $region5
  $region4: #{_lambda_.2} parent=0 // pred_region
    _
  $region5: #{_lambda_.2} parent=0 // pred_fallthru
    _
  // Predicated region
  $region6: #{_lambda_.2} parent=0 // pred_check
    _
  $region7: #{_lambda_.2} parent=0 // pred_check_branch
    %10 = sbr.rel (0) target = $region9
  $region8: #{_lambda_.2} parent=0 // pred_region
    _
  $region9: #{_lambda_.2} parent=0 // pred_fallthru
    _
  %v12 = vld [vmem:[%s0] sm:$0xf]
  %v13 = vld [vmem:[%s1] sm:$0xff]
  %v14 = vld [vmem:[%s1 + $0x8] sm:$0xff]
  %v15 = vld [vmem:[%s1 + $0x10] sm:$0xff]
  %v16 = vld [vmem:[%s1 + $0x18] sm:$0xff]
  %v17 = vld [vmem:[%s1 + $0x20] sm:$0xff]
  %v18 = vld [vmem:[%s1 + $0x28] sm:$0xff]
  %v19 = vld [vmem:[%s1 + $0x30] sm:$0xff]
  %v20 = vld [vmem:[%s1 + $0x38] sm:$0xff]
  %v21 = vld [vmem:[%s1 + $0x40] sm:$0xff]
  %v22 = vld [vmem:[%s1 + $0x48] sm:$0xff]
  %v23 = vld [vmem:[%s1 + $0x50] sm:$0xff]
  %v24 = vld [vmem:[%s1 + $0x58] sm:$0xff]
  %v25 = vld [vmem:[%s1 + $0x60] sm:$0xff]
  %v26 = vld [vmem:[%s1 + $0x68] sm:$0xff]
  %v27 = vld [vmem:[%s1 + $0x70] sm:$0xff]
  %v28 = vld [vmem:[%s1 + $0x78] sm:$0xff]
  %v45 = vunpack.c.l.b16 %v13
  %v46 = vunpack.c.h.b16 %v13
  %v47 = vunpack.c.l.b16 %v14
  %v48 = vunpack.c.h.b16 %v14
  %v49 = vunpack.c.l.b16 %v15
  %v50 = vunpack.c.h.b16 %v15
  %v51 = vunpack.c.l.b16 %v16
  %v52 = vunpack.c.h.b16 %v16
  %v53 = vunpack.c.l.b16 %v17
  %v54 = vunpack.c.h.b16 %v17
  %v55 = vunpack.c.l.b16 %v18
  %v56 = vunpack.c.h.b16 %v18
  %v57 = vunpack.c.l.b16 %v19
  %v58 = vunpack.c.h.b16 %v19
  %v59 = vunpack.c.l.b16 %v20
  %v60 = vunpack.c.h.b16 %v20
  %v61 = vunpack.c.l.b16 %v21
  %v62 = vunpack.c.h.b16 %v21
  %v63 = vunpack.c.l.b16 %v22
  %v64 = vunpack.c.h.b16 %v22
  %v65 = vunpack.c.l.b16 %v23
  %v66 = vunpack.c.h.b16 %v23
  %v67 = vunpack.c.l.b16 %v24
  %v68 = vunpack.c.h.b16 %v24
  %v69 = vunpack.c.l.b16 %v25
  %v70 = vunpack.c.h.b16 %v25
  %v71 = vunpack.c.l.b16 %v26
  %v72 = vunpack.c.h.b16 %v26
  %v73 = vunpack.c.l.b16 %v27
  %v74 = vunpack.c.h.b16 %v27
  %v75 = vunpack.c.l.b16 %v28
  %v76 = vunpack.c.h.b16 %v28
  %v77 = vpack.c.b16 %v47, %v45
  %v78 = vpack.c.b16 %v48, %v46
  %v79 = vpack.c.b16 %v51, %v49
  %v80 = vpack.c.b16 %v52, %v50
  %v81 = vpack.c.b16 %v55, %v53
  %v82 = vpack.c.b16 %v56, %v54
  %v83 = vpack.c.b16 %v59, %v57
  %v84 = vpack.c.b16 %v60, %v58
  %v85 = vpack.c.b16 %v63, %v61
  %v86 = vpack.c.b16 %v64, %v62
  %v87 = vpack.c.b16 %v67, %v65
  %v88 = vpack.c.b16 %v68, %v66
  %v89 = vpack.c.b16 %v71, %v69
  %v90 = vpack.c.b16 %v72, %v70
  %v91 = vpack.c.b16 %v75, %v73
  %v92 = vpack.c.b16 %v76, %v74
  %109 = vmatprep.subr.bf16.mxu0 %v78
  %110 = vmatpush1.bf16.msra.mxu0 %v77
  %111 = vmatprep.subr.bf16.mxu0 %v80
  %112 = vmatpush1.bf16.msra.mxu0 %v79
  %113 = vmatprep.subr.bf16.mxu0 %v82
  %114 = vmatpush1.bf16.msra.mxu0 %v81
  %115 = vmatprep.subr.bf16.mxu0 %v84
  %116 = vmatpush1.bf16.msra.mxu0 %v83
  %117 = vmatprep.subr.bf16.mxu0 %v86
  %118 = vmatpush1.bf16.msra.mxu0 %v85
  %119 = vmatprep.subr.bf16.mxu0 %v88
  %120 = vmatpush1.bf16.msra.mxu0 %v87
  %121 = vmatprep.subr.bf16.mxu0 %v90
  %122 = vmatpush1.bf16.msra.mxu0 %v89
  %123 = vmatprep.subr.bf16.mxu0 %v92
  %124 = vmatpush1.bf16.msra.mxu0 %v91
  %125 = vmatprep.subr.bf16.mxu0 0
  %126 = vmatpush1.bf16.msra.mxu0 0
  %127 = vmatprep.subr.bf16.mxu0 0
  %128 = vmatpush1.bf16.msra.mxu0 0
  %129 = vmatprep.subr.bf16.mxu0 0
  %130 = vmatpush1.bf16.msra.mxu0 0
  %131 = vmatprep.subr.bf16.mxu0 0
  %132 = vmatpush1.bf16.msra.mxu0 0
  %133 = vmatprep.subr.bf16.mxu0 0
  %134 = vmatpush1.bf16.msra.mxu0 0
  %135 = vmatprep.subr.bf16.mxu0 0
  %136 = vmatpush1.bf16.msra.mxu0 0
  %137 = vmatprep.subr.bf16.mxu0 0
  %138 = vmatpush1.bf16.msra.mxu0 0
  %139 = vmatprep.subr.bf16.mxu0 0
  %140 = vmatpush1.bf16.msra.mxu0 0
  %141 = vmatprep.mubr.bf16.mxu0 0
  %142 = vmatmul.mubr.bf16.gmra.mrb[0].mxu0 %v12
  %v143 = vpop.f32.mrb[0].mxu0
  %v144 = vadd.f32 0.0, %v143
  %v145 = vpop.f32.mrb[0].mxu0
  %v146 = vadd.f32 0.0, %v145
  %v147 = vpop.f32.mrb[0].mxu0
  %v148 = vpop.f32.mrb[0].mxu0
  %149 = vdwg.mxu0
  %v150 = vmax.f32 %v144, 0.0
  %v151 = vmax.f32 %v146, 0.0
  %152 = vst [vmem:[%s2] sm:$0xff] %v150
  %153 = vst [vmem:[%s2 + $0x8] sm:$0xff] %v151
  // Predicated region
  $region10: #{_lambda_.2} parent=0 // pred_check
    _
  $region11: #{_lambda_.2} parent=0 // pred_check_branch
    %155 = sbr.rel (0) target = $region13
  $region12: #{_lambda_.2} parent=0 // pred_region
    _
  $region13: #{_lambda_.2} parent=0 // pred_fallthru
    _
  // Predicated region
  $region14: #{_lambda_.2} parent=0 // pred_check
    _
  $region15: #{_lambda_.2} parent=0 // pred_check_branch
    %157 = sbr.rel (0) target = $region17
  $region16: #{_lambda_.2} parent=0 // pred_region
    _
  $region17: #{_lambda_.2} parent=0 // pred_fallthru
    _

// kernel: _lambda_.3
$region0: #{_lambda_.3}
  #allocation0 [shape = 'u32[]', space=smem, size = 0x4, offset = 0x4, fixed_abs, tag = 'smem constant byte address 0x4 - core index']
  #allocation1 [shape = 'u32[144,128]{1,0:T(1,128)}', space=vmem, size = 0x12000, scoped, tag = 'internal scratch']
  #allocation2 [shape = 's32[1]{0}', space=sflag, size = 0x4, scoped, tag = 'scoped memory for _lambda_.3']
  #allocation3 [shape = 's32[1,1]{1,0:T(1,128)S(6)}', space=smem, size = 0x200, scoped, tag = 'prefetched SMEM operand 0']
  %s0 = inlined_call_operand.<no memory space> [shape: s32[1,1], index: 0, kind: input, shape index: {}]
  %s1 = inlined_call_operand.vmem [shape: bf16[8,256], index: 1, kind: input, shape index: {}]
  %s2 = inlined_call_operand.vmem [shape: bf16[256,128], index: 2, kind: input, shape index: {}]
  %s3 = inlined_call_operand.vmem [shape: f32[1,128], index: 3, kind: input, shape index: {}]
  %s4 = inlined_call_operand.vmem [shape: f32[8,128], index: 4, kind: output, shape index: {}]
  %s5 = sld [smem:[#allocation0]]
  $region30: #{_lambda_.3} parent=0
    _
  %s7 = ssub.s32 1, %s5
  %s8 = scalar_select 0, %s7, %s5
  %9 = sst [smem:[#allocation3]] %s0
  // Predicated region
  $region2: #{_lambda_.3} parent=0 // pred_check
    _
  $region3: #{_lambda_.3} parent=0 // pred_check_branch
    %11 = sbr.rel (0) target = $region5
  $region4: #{_lambda_.3} parent=0 // pred_region
    _
  $region5: #{_lambda_.3} parent=0 // pred_fallthru
    _
  // Predicated region
  $region6: #{_lambda_.3} parent=0 // pred_check
    _
  $region7: #{_lambda_.3} parent=0 // pred_check_branch
    %13 = sbr.rel (0) target = $region9
  $region8: #{_lambda_.3} parent=0 // pred_region
    _
  $region9: #{_lambda_.3} parent=0 // pred_fallthru
    _
  // Predicated region
  $region10: #{_lambda_.3} parent=0 // pred_check
    _
  $region11: #{_lambda_.3} parent=0 // pred_check_branch
    %15 = sbr.rel (0) target = $region13
  $region12: #{_lambda_.3} parent=0 // pred_region
    _
  $region13: #{_lambda_.3} parent=0 // pred_fallthru
    _
  %p17 = scmp.eq.s32.totalorder 0, 0
  // Predicated region
  $region14: #{_lambda_.3} parent=0 // pred_check
    %p18 = pneg %p17
  $region15: #{_lambda_.3} parent=0 // pred_check_branch
    %20 = sbr.rel (%p18) target = $region17
  $region16: #{_lambda_.3} parent=0 // pred_region
    %v21 = vld [vmem:[%s3] sm:$0x1]
    %v23 = vlaneseq
    %v24 = vshrl.u32 %v23, 7
    %v25 = vsub.s32 0, %v24
    %v26 = vrot.slane %v21, %v25
    %28 = vst [vmem:[%s4] sm:$0xff] %v26
  $region17: #{_lambda_.3} parent=0 // pred_fallthru
    _
  %s29 = sadd.s32 0, 0
  %s30 = smul.u32 %s29, 128
  %s31 = sadd.s32 %s30, 0
  %s32 = sld [smem:[#allocation3 + %s31]]
  %p33 = scmp.ne.s32.totalorder %s32, 0
  // Predicated region
  $region18: #{_lambda_.3} parent=0 // pred_check
    %p34 = pneg %p33
  $region19: #{_lambda_.3} parent=0 // pred_check_branch
    %36 = sbr.rel (%p34) target = $region21
  $region20: #{_lambda_.3} parent=0 // pred_region
    %v37 = vld [vmem:[%s4] sm:$0xff]
    %v38 = vld [vmem:[%s1] sm:$0xff]
    %v39 = vld [vmem:[%s2] sm:$0xf]
    %v40 = vld [vmem:[%s2 + $0x4] sm:$0xf]
    %v41 = vld [vmem:[%s2 + $0x8] sm:$0xf]
    %v42 = vld [vmem:[%s2 + $0xc] sm:$0xf]
    %v43 = vld [vmem:[%s2 + $0x10] sm:$0xf]
    %v44 = vld [vmem:[%s2 + $0x14] sm:$0xf]
    %v45 = vld [vmem:[%s2 + $0x18] sm:$0xf]
    %v46 = vld [vmem:[%s2 + $0x1c] sm:$0xf]
    %v47 = vld [vmem:[%s2 + $0x20] sm:$0xf]
    %v48 = vld [vmem:[%s2 + $0x24] sm:$0xf]
    %v49 = vld [vmem:[%s2 + $0x28] sm:$0xf]
    %v50 = vld [vmem:[%s2 + $0x2c] sm:$0xf]
    %v51 = vld [vmem:[%s2 + $0x30] sm:$0xf]
    %v52 = vld [vmem:[%s2 + $0x34] sm:$0xf]
    %v53 = vld [vmem:[%s2 + $0x38] sm:$0xf]
    %v54 = vld [vmem:[%s2 + $0x3c] sm:$0xf]
    %v55 = vld [vmem:[%s2 + $0x40] sm:$0xf]
    %v56 = vld [vmem:[%s2 + $0x44] sm:$0xf]
    %v57 = vld [vmem:[%s2 + $0x48] sm:$0xf]
    %v58 = vld [vmem:[%s2 + $0x4c] sm:$0xf]
    %v59 = vld [vmem:[%s2 + $0x50] sm:$0xf]
    %v60 = vld [vmem:[%s2 + $0x54] sm:$0xf]
    %v61 = vld [vmem:[%s2 + $0x58] sm:$0xf]
    %v62 = vld [vmem:[%s2 + $0x5c] sm:$0xf]
    %v63 = vld [vmem:[%s2 + $0x60] sm:$0xf]
    %v64 = vld [vmem:[%s2 + $0x64] sm:$0xf]
    %v65 = vld [vmem:[%s2 + $0x68] sm:$0xf]
    %v66 = vld [vmem:[%s2 + $0x6c] sm:$0xf]
    %v67 = vld [vmem:[%s2 + $0x70] sm:$0xf]
    %v68 = vld [vmem:[%s2 + $0x74] sm:$0xf]
    %v69 = vld [vmem:[%s2 + $0x78] sm:$0xf]
    %v70 = vld [vmem:[%s2 + $0x7c] sm:$0xf]
    %v72 = vunpack.c.l.b16 %v38
    %v73 = vunpack.c.h.b16 %v38
    %v74 = vpack.c.b16 %v72, %v72
    %v75 = vpack.c.b16 %v73, %v73
    %v110 = vunpack.c.l.b16 %v39
    %v111 = vunpack.c.l.b16 %v40
    %v112 = vunpack.c.l.b16 %v41
    %v113 = vunpack.c.l.b16 %v42
    %v114 = vunpack.c.l.b16 %v43
    %v115 = vunpack.c.l.b16 %v44
    %v116 = vunpack.c.l.b16 %v45
    %v117 = vunpack.c.l.b16 %v46
    %v118 = vunpack.c.l.b16 %v47
    %v119 = vunpack.c.l.b16 %v48
    %v120 = vunpack.c.l.b16 %v49
    %v121 = vunpack.c.l.b16 %v50
    %v122 = vunpack.c.l.b16 %v51
    %v123 = vunpack.c.l.b16 %v52
    %v124 = vunpack.c.l.b16 %v53
    %v125 = vunpack.c.l.b16 %v54
    %v126 = vunpack.c.l.b16 %v55
    %v127 = vunpack.c.l.b16 %v56
    %v128 = vunpack.c.l.b16 %v57
    %v129 = vunpack.c.l.b16 %v58
    %v130 = vunpack.c.l.b16 %v59
    %v131 = vunpack.c.l.b16 %v60
    %v132 = vunpack.c.l.b16 %v61
    %v133 = vunpack.c.l.b16 %v62
    %v134 = vunpack.c.l.b16 %v63
    %v135 = vunpack.c.l.b16 %v64
    %v136 = vunpack.c.l.b16 %v65
    %v137 = vunpack.c.l.b16 %v66
    %v138 = vunpack.c.l.b16 %v67
    %v139 = vunpack.c.l.b16 %v68
    %v140 = vunpack.c.l.b16 %v69
    %v141 = vunpack.c.l.b16 %v70
    %v142 = vpack.c.b16 %v111, %v110
    %v143 = vpack.c.b16 %v113, %v112
    %v144 = vpack.c.b16 %v115, %v114
    %v145 = vpack.c.b16 %v117, %v116
    %v146 = vpack.c.b16 %v119, %v118
    %v147 = vpack.c.b16 %v121, %v120
    %v148 = vpack.c.b16 %v123, %v122
    %v149 = vpack.c.b16 %v125, %v124
    %v150 = vpack.c.b16 %v127, %v126
    %v151 = vpack.c.b16 %v129, %v128
    %v152 = vpack.c.b16 %v131, %v130
    %v153 = vpack.c.b16 %v133, %v132
    %v154 = vpack.c.b16 %v135, %v134
    %v155 = vpack.c.b16 %v137, %v136
    %v156 = vpack.c.b16 %v139, %v138
    %v157 = vpack.c.b16 %v141, %v140
    %174 = vmatprep.subr.bf16.mxu0 0
    %175 = vmatpush1.bf16.msra.mxu0 %v142
    %176 = vmatprep.subr.bf16.mxu0 0
    %177 = vmatpush1.bf16.msra.mxu0 %v143
    %178 = vmatprep.subr.bf16.mxu0 0
    %179 = vmatpush1.bf16.msra.mxu0 %v144
    %180 = vmatprep.subr.bf16.mxu0 0
    %181 = vmatpush1.bf16.msra.mxu0 %v145
    %182 = vmatprep.subr.bf16.mxu0 0
    %183 = vmatpush1.bf16.msra.mxu0 %v146
    %184 = vmatprep.subr.bf16.mxu0 0
    %185 = vmatpush1.bf16.msra.mxu0 %v147
    %186 = vmatprep.subr.bf16.mxu0 0
    %187 = vmatpush1.bf16.msra.mxu0 %v148
    %188 = vmatprep.subr.bf16.mxu0 0
    %189 = vmatpush1.bf16.msra.mxu0 %v149
    %190 = vmatprep.subr.bf16.mxu0 0
    %191 = vmatpush1.bf16.msra.mxu0 %v150
    %192 = vmatprep.subr.bf16.mxu0 0
    %193 = vmatpush1.bf16.msra.mxu0 %v151
    %194 = vmatprep.subr.bf16.mxu0 0
    %195 = vmatpush1.bf16.msra.mxu0 %v152
    %196 = vmatprep.subr.bf16.mxu0 0
    %197 = vmatpush1.bf16.msra.mxu0 %v153
    %198 = vmatprep.subr.bf16.mxu0 0
    %199 = vmatpush1.bf16.msra.mxu0 %v154
    %200 = vmatprep.subr.bf16.mxu0 0
    %201 = vmatpush1.bf16.msra.mxu0 %v155
    %202 = vmatprep.subr.bf16.mxu0 0
    %203 = vmatpush1.bf16.msra.mxu0 %v156
    %204 = vmatprep.subr.bf16.mxu0 0
    %205 = vmatpush1.bf16.msra.mxu0 %v157
    %206 = vmatprep.mubr.bf16.mxu0 %v75
    %207 = vmatmul.mubr.bf16.gmra.mrb[0].mxu0 %v74
    %v208 = vpop.f32.mrb[0].mxu0
    %v209 = vadd.f32 0.0, %v208
    %v210 = vpop.f32.mrb[0].mxu0
    %v211 = vpop.f32.mrb[0].mxu0
    %v212 = vpop.f32.mrb[0].mxu0
    %213 = vdwg.mxu0
    %v214 = vadd.f32 %v37, %v209
    %215 = vst [vmem:[%s4] sm:$0xff] %v214
  $region21: #{_lambda_.3} parent=0 // pred_fallthru
    _
  // Predicated region
  $region22: #{_lambda_.3} parent=0 // pred_check
    _
  $region23: #{_lambda_.3} parent=0 // pred_check_branch
    %217 = sbr.rel (0) target = $region25
  $region24: #{_lambda_.3} parent=0 // pred_region
    _
  $region25: #{_lambda_.3} parent=0 // pred_fallthru
    _
  // Predicated region
  $region26: #{_lambda_.3} parent=0 // pred_check
    _
  $region27: #{_lambda_.3} parent=0 // pred_check_branch
    %219 = sbr.rel (0) target = $region29
  $region28: #{_lambda_.3} parent=0 // pred_region
    _
  $region29: #{_lambda_.3} parent=0 // pred_fallthru
    _

</llo_original>
